<compile_context>
chip_gen: v5e
topology: v5e:2x2
jax: 0.10.0
libtpu: 0.0.40
codegen_flags: <defaults>
</compile_context>

<pallas_src>
import functools
import math

import jax
import jax.numpy as jnp
from jax import lax
from jax.experimental import pallas as pl
from jax.experimental.pallas import tpu as pltpu

_NEG_FILL = -1e9   # logit value for the masked background column -> softmax weight 0
_BIG = 3.0e38      # "+/- inf" stand-in for masked min/max (float32-safe, no inf arithmetic)


def _round_up(a: int, b: int) -> int:
    return (a + b - 1) // b * b


# ---------------------------------------------------------------------------
# Kernel: per-(tm, C_total) row tile -> (1, 128) lane-dense partial
#   lane 0 = sum of seesaw-CE losses over valid rows in the block
#   lane 1 = number of valid rows (in-bounds and bg != 1)
# The whole class axis stays resident (softmax / mitigation / compensation couple
# the full row), only the batch axis is tiled, and the grid axis is 'parallel'.
# ---------------------------------------------------------------------------
def _seesaw_kernel(x_ref, t_ref, logcum_ref, o_ref, *, p, q, log_eps, n_rows, tm):
    x = x_ref[...].astype(jnp.float32)                 # (tm, Ct) logits incl. background col
    t = t_ref[...].astype(jnp.float32)                 # (tm, Ct) targets incl. background col
    log_cum = logcum_ref[...].astype(jnp.float32)      # (1, Ct), col 0 = 0, = log(clamp(cum,1))

    tm_, ct = x.shape
    col = lax.broadcasted_iota(jnp.int32, (tm_, ct), 1)
    notice = col >= 1                                  # drop background column in-kernel

    # row validity: inside the real batch and not a pure-background row
    row = lax.broadcasted_iota(jnp.int32, (tm_, 1), 0) + pl.program_id(0) * tm
    bg = jnp.sum(jnp.where(col == 0, t, 0.0), axis=1, keepdims=True)     # == target[:, 0]
    valid = jnp.logical_and(row < n_rows, bg != 1.0)                     # (tm, 1)

    t_n = jnp.where(notice, t, 0.0)
    x_n = jnp.where(notice, x, _NEG_FILL)
    pos = t_n != 0.0

    # ---- mitigation factor (p branch), log space ----
    # min_{i in pos} min(1, cum[j]/cum[i])**p == exp(p * min(0, log_cum[j] - max_pos log_cum))
    log_max_pos = jnp.max(jnp.where(pos, log_cum, -_BIG), axis=1, keepdims=True)   # (tm, 1)
    log_mit = p * jnp.minimum(log_cum - log_max_pos, 0.0)   # (tm, Ct); 0 when row has no positives

    # ---- compensation factor (q branch), log space, softmax never materialized ----
    m = jnp.max(x_n, axis=1, keepdims=True)
    z = x_n - m
    e = jnp.exp(z)                                           # transcendental pass #1
    lse0 = jnp.log(jnp.sum(e, axis=1, keepdims=True))        # (tm, 1)
    min_pos_z = jnp.min(jnp.where(pos, z, _BIG), axis=1, keepdims=True)
    log_denom = jnp.maximum(min_pos_z - lse0, log_eps)       # log(max(self_score, eps)); huge if no pos
    log_comp = q * jnp.maximum(z - (lse0 + log_denom), 0.0)  # (tm, Ct); 0 when row has no positives

    # ---- seesaw-adjusted logits -> per-row cross entropy ----
    x2 = x_n + (log_mit + log_comp) * (1.0 - t_n)
    m2 = jnp.max(x2, axis=1, keepdims=True)
    e2 = jnp.exp(x2 - m2)                                    # transcendental pass #2
    lse2 = m2 + jnp.log(jnp.sum(e2, axis=1, keepdims=True))
    out_n = jnp.sum(t_n * (lse2 - x2), axis=1, keepdims=True)   # (tm, 1) == sum(-t*log_softmax(x2))

    # ---- lane-dense per-block partials ----
    psum = jnp.sum(jnp.where(valid, out_n, 0.0), axis=0, keepdims=True)   # (1, 1)
    pcnt = jnp.sum(valid.astype(jnp.float32), axis=0, keepdims=True)      # (1, 1)
    lane = lax.broadcasted_iota(jnp.int32, o_ref.shape, 1)
    o_ref[...] = (jnp.where(lane == 0, psum, 0.0)
                  + jnp.where(lane == 1, pcnt, 0.0)).astype(o_ref.dtype)


# ---------------------------------------------------------------------------
# Wrapper: cum_samples update (plain XLA), one pallas_call, tiny final reduce.
# ---------------------------------------------------------------------------
def multip_cross_entropy_seesaw_loss(logits, targets, cum_samples=None, *,
                                     p=0.8, q=2.0, eps=0.01,
                                     ignore_index=0, reduction="mean"):
    assert ignore_index == 0, "module asserts ignore_index == 0"
    n, c_total = logits.shape
    assert targets.shape == (n, c_total)
    c = c_total - 1                                      # notice (non-background) classes
    if cum_samples is None:
        cum_samples = jnp.zeros((c,), jnp.float32)

    # Running per-class counts: plain XLA column-sum already hits the HBM roofline,
    # so no separate Pallas kernel (feedback: drop kernel 1).
    colsum = jnp.sum(targets.astype(jnp.float32), axis=0)            # (c_total,)
    cum_new = cum_samples.astype(jnp.float32) + colsum[1:]
    log_cum = jnp.log(jnp.maximum(cum_new, 1.0))                     # (c,)
    log_cum_full = jnp.concatenate(
        [jnp.zeros((1,), jnp.float32), log_cum]).reshape(1, c_total)  # col 0 (bg) = 0

    # ---- row-tile sizing: ~1 MiB per input block, multiple of 16 rows (bf16-safe) ----
    c_lanes = _round_up(c_total, 128)                    # VMEM lane footprint of one row
    tm = max(16, ((1 << 20) // (c_lanes * 4)) // 16 * 16)
    tm = min(tm, 2048)
    # keep >= 2 blocks when possible so v7x megacore can use both TensorCores
    tm = min(tm, max(16, _round_up((n + 1) // 2, 16)))
    n_blocks = pl.cdiv(n, tm)
    # rows are NOT padded: the ragged last block is masked in-kernel via (global_row < n)

    kernel = functools.partial(_seesaw_kernel, p=float(p), q=float(q),
                               log_eps=float(math.log(eps)), n_rows=n, tm=tm)
    bytes_accessed = int(logits.size * logits.dtype.itemsize
                         + targets.size * targets.dtype.itemsize
                         + c_total * 4 + n_blocks * 128 * 4)
    partials = pl.pallas_call(
        kernel,
        out_shape=jax.ShapeDtypeStruct((n_blocks, 1, 128), jnp.float32),
        grid_spec=pltpu.PrefetchScalarGridSpec(
            num_scalar_prefetch=0,
            grid=(n_blocks,),
            in_specs=[
                pl.BlockSpec((tm, c_total), lambda i: (i, 0)),     # logits (full class axis)
                pl.BlockSpec((tm, c_total), lambda i: (i, 0)),     # targets (full class axis)
                pl.BlockSpec((1, c_total), lambda i: (0, 0)),      # log(clamp(cum,1))
            ],
            out_specs=pl.BlockSpec((None, 1, 128), lambda i: (i, 0, 0)),
        ),
        compiler_params=pltpu.CompilerParams(
            dimension_semantics=("parallel",),
            vmem_limit_bytes=32 * 1024 * 1024),
        cost_estimate=pl.CostEstimate(
            flops=int(20 * n * c_lanes),
            transcendentals=int(2 * n * c_lanes),
            bytes_accessed=bytes_accessed),
    )(logits, targets, log_cum_full)

    total = jnp.sum(partials[:, 0, 0])
    cnt = jnp.sum(partials[:, 0, 1])
    if reduction == "mean":
        loss = jnp.where(cnt > 0.0, total / jnp.maximum(cnt, 1.0), 0.0)
    elif reduction == "sum":
        loss = jnp.where(cnt > 0.0, total, 0.0)
    else:
        # TODO(synk): torch's reduction='none' returns output[bg != 1] (data-dependent
        # length); only 'mean'/'sum' are supported by this Pallas port.
        raise NotImplementedError("reduction='none' not supported by the Pallas port")
    return loss, cum_new


# ---------------------------------------------------------------------------
# Pure-JAX reference (faithful transcription of the PyTorch forward).
# ---------------------------------------------------------------------------
def _seesaw_ref(logits, targets, cum_samples, *, p, q, eps):
    inp = logits.astype(jnp.float32)
    tgt = targets.astype(jnp.float32)
    bg = tgt[:, 0]
    x = inp[:, 1:]
    t = tgt[:, 1:]
    cum = cum_samples.astype(jnp.float32) + jnp.sum(t, axis=0)
    n_rows, c = x.shape
    seesaw = jnp.ones((n_rows, c), jnp.float32)
    mask = t != 0.0
    has_pos = jnp.any(mask, axis=1, keepdims=True)
    big = jnp.float32(_BIG)
    if p > 0:
        cum_c = jnp.maximum(cum, 1.0)
        ratio_mat = cum_c[None, :] / cum_c[:, None]          # [i, j] = cum[j]/cum[i]
        idx = (ratio_mat < 1.0).astype(jnp.float32)
        sw = ratio_mat ** p * idx + (1.0 - idx)
        mit = jnp.min(jnp.where(mask[:, :, None], sw[None, :, :], big), axis=1)
        mit = jnp.where(has_pos, mit, 1.0)
        seesaw = seesaw * mit
    if q > 0:
        s = jax.nn.softmax(x, axis=1)
        self_s = jnp.min(jnp.where(mask, s, big), axis=1, keepdims=True)
        self_s = jnp.where(has_pos, self_s, 1.0)
        score_mat = s / jnp.maximum(self_s, eps)
        idx2 = (score_mat > 1.0).astype(jnp.float32)
        comp = score_mat ** q * idx2 + (1.0 - idx2)
        seesaw = seesaw * comp
    x2 = x + jnp.log(seesaw) * (1.0 - t)
    out = jnp.sum(-t * jax.nn.log_softmax(x2, axis=1), axis=1)
    valid = bg != 1.0
    cnt = jnp.sum(valid.astype(jnp.float32))
    total = jnp.sum(jnp.where(valid, out, 0.0))
    loss = jnp.where(cnt > 0.0, total / jnp.maximum(cnt, 1.0), 0.0)
    return loss, cum


if __name__ == "__main__":
    key = jax.random.PRNGKey(0)
    k1, k2, k3 = jax.random.split(key, 3)

    # Small shapes consistent with the module: (batch*seq, 1 background + C action classes).
    N, C_TOTAL = 10, 97          # 96 notice classes; class axis stays unpadded end-to-end

    logits = jax.random.normal(k1, (N, C_TOTAL), dtype=jnp.float32)
    labels = jax.random.randint(k2, (N,), 1, C_TOTAL)        # one positive action per row
    targets = jax.nn.one_hot(labels, C_TOTAL, dtype=jnp.float32)
    targets = targets.at[1, 7].set(1.0).at[3, 20].set(1.0)   # a couple of multi-label rows
    targets = targets.at[4].set(0.0).at[4, 0].set(1.0)       # pure-background rows (bg == 1,
    targets = targets.at[8].set(0.0).at[8, 0].set(1.0)       #   excluded from the mean)
    cum0 = jnp.floor(jax.random.uniform(k3, (C_TOTAL - 1,), minval=0.0, maxval=50.0))

    loss, cum_new = jax.jit(multip_cross_entropy_seesaw_loss)(logits, targets, cum0)
    loss = jax.block_until_ready(loss)

    ref_loss, ref_cum = _seesaw_ref(logits, targets, cum0, p=0.8, q=2.0, eps=0.01)
    assert jnp.allclose(loss, ref_loss, rtol=1e-4, atol=1e-4), (loss, ref_loss)
    assert jnp.allclose(cum_new, ref_cum, rtol=1e-5, atol=1e-5), "cum_samples mismatch"

    print("KERNEL_OK")
</pallas_src>

<mosaic_0001>
module attributes {stable_mosaic.version = 11 : i64} {
  func.func @_seesaw_kernel(%arg0: i32, %arg1: memref<16x97xf32, #tpu.memory_space<vmem>>, %arg2: memref<16x97xf32, #tpu.memory_space<vmem>>, %arg3: memref<1x97xf32, #tpu.memory_space<vmem>>, %arg4: memref<1x1x128xf32, #tpu.memory_space<vmem>>) attributes {dimension_semantics = [#tpu.dimension_semantics<parallel>], iteration_bounds = array<i64: 1>, scalar_prefetch = 0 : i64, scratch_operands = 0 : i64, tpu.core_type = #tpu.core_type<tc>, window_params = [{transform_indices = @transform_0, window_bounds = array<i64: 16, 97>}, {transform_indices = @transform_1, window_bounds = array<i64: 16, 97>}, {pipeline_mode = #tpu.pipeline_mode<synchronous>, transform_indices = @transform_2, window_bounds = array<i64: 1, 97>}, {transform_indices = @transform_3, window_bounds = array<i64: 1, 1, 128>}]} {
    %c0 = arith.constant 0 : index
    %c0_0 = arith.constant 0 : index
    %0 = vector.load %arg1[%c0, %c0_0] : memref<16x97xf32, #tpu.memory_space<vmem>>, vector<16x97xf32>
    %c0_1 = arith.constant 0 : index
    %c0_2 = arith.constant 0 : index
    %1 = vector.load %arg2[%c0_1, %c0_2] : memref<16x97xf32, #tpu.memory_space<vmem>>, vector<16x97xf32>
    %c0_3 = arith.constant 0 : index
    %c0_4 = arith.constant 0 : index
    %2 = vector.load %arg3[%c0_3, %c0_4] : memref<1x97xf32, #tpu.memory_space<vmem>>, vector<1x97xf32>
    %3 = tpu.iota {dimensions = array<i32: 1>} : vector<16x97xi32>
    %c1_i32 = arith.constant 1 : i32
    %4 = vector.broadcast %c1_i32 : i32 to vector<16x97xi32>
    %5 = arith.cmpi sge, %3, %4 : vector<16x97xi32>
    %6 = tpu.iota {dimensions = array<i32: 0>} : vector<16x1xi32>
    %c16_i32 = arith.constant 16 : i32
    %7 = arith.muli %arg0, %c16_i32 : i32
    %8 = vector.broadcast %7 : i32 to vector<16x1xi32>
    %9 = arith.addi %6, %8 : vector<16x1xi32>
    %c0_i32 = arith.constant 0 : i32
    %10 = vector.broadcast %c0_i32 : i32 to vector<16x97xi32>
    %11 = arith.cmpi eq, %3, %10 : vector<16x97xi32>
    %cst = arith.constant 0.000000e+00 : f32
    %12 = vector.broadcast %cst : f32 to vector<16x97xf32>
    %13 = arith.select %11, %1, %12 : vector<16x97xi1>, vector<16x97xf32>
    %cst_5 = arith.constant dense<0.000000e+00> : vector<16xf32>
    %14 = vector.multi_reduction <add>, %13, %cst_5 [1] : vector<16x97xf32> to vector<16xf32>
    %15 = vector.shape_cast %14 : vector<16xf32> to vector<16x1xf32>
    %c10_i32 = arith.constant 10 : i32
    %16 = vector.broadcast %c10_i32 : i32 to vector<16x1xi32>
    %17 = arith.cmpi slt, %9, %16 : vector<16x1xi32>
    %cst_6 = arith.constant 1.000000e+00 : f32
    %18 = vector.broadcast %cst_6 : f32 to vector<16x1xf32>
    %19 = arith.cmpf one, %15, %18 : vector<16x1xf32>
    %20 = arith.andi %17, %19 : vector<16x1xi1>
    %cst_7 = arith.constant 0.000000e+00 : f32
    %21 = vector.broadcast %cst_7 : f32 to vector<16x97xf32>
    %22 = arith.select %5, %1, %21 : vector<16x97xi1>, vector<16x97xf32>
    %cst_8 = arith.constant -1.000000e+09 : f32
    %23 = vector.broadcast %cst_8 : f32 to vector<16x97xf32>
    %24 = arith.select %5, %0, %23 : vector<16x97xi1>, vector<16x97xf32>
    %cst_9 = arith.constant 0.000000e+00 : f32
    %25 = vector.broadcast %cst_9 : f32 to vector<16x97xf32>
    %26 = arith.cmpf one, %22, %25 : vector<16x97xf32>
    %cst_10 = arith.constant -3.000000e+38 : f32
    %27 = vector.shape_cast %2 : vector<1x97xf32> to vector<1x97xf32>
    %28 = vector.broadcast %27 : vector<1x97xf32> to vector<16x97xf32>
    %29 = vector.broadcast %cst_10 : f32 to vector<16x97xf32>
    %30 = arith.select %26, %28, %29 : vector<16x97xi1>, vector<16x97xf32>
    %cst_11 = arith.constant dense<0xFF800000> : vector<16xf32>
    %31 = vector.multi_reduction <maximumf>, %30, %cst_11 [1] : vector<16x97xf32> to vector<16xf32>
    %32 = vector.shape_cast %31 : vector<16xf32> to vector<16x1xf32>
    %33 = vector.broadcast %2 : vector<1x97xf32> to vector<16x97xf32>
    %34 = vector.broadcast %32 : vector<16x1xf32> to vector<16x97xf32>
    %35 = arith.subf %33, %34 : vector<16x97xf32>
    %cst_12 = arith.constant 0.000000e+00 : f32
    %36 = vector.broadcast %cst_12 : f32 to vector<16x97xf32>
    %37 = arith.minimumf %35, %36 : vector<16x97xf32>
    %cst_13 = arith.constant 8.000000e-01 : f32
    %38 = vector.broadcast %cst_13 : f32 to vector<16x97xf32>
    %39 = arith.mulf %38, %37 : vector<16x97xf32>
    %cst_14 = arith.constant dense<0xFF800000> : vector<16xf32>
    %40 = vector.multi_reduction <maximumf>, %24, %cst_14 [1] : vector<16x97xf32> to vector<16xf32>
    %41 = vector.shape_cast %40 : vector<16xf32> to vector<16x1xf32>
    %42 = vector.broadcast %41 : vector<16x1xf32> to vector<16x97xf32>
    %43 = arith.subf %24, %42 : vector<16x97xf32>
    %44 = math.exp %43 : vector<16x97xf32>
    %cst_15 = arith.constant dense<0.000000e+00> : vector<16xf32>
    %45 = vector.multi_reduction <add>, %44, %cst_15 [1] : vector<16x97xf32> to vector<16xf32>
    %46 = vector.shape_cast %45 : vector<16xf32> to vector<16x1xf32>
    %47 = math.log %46 : vector<16x1xf32>
    %cst_16 = arith.constant 3.000000e+38 : f32
    %48 = vector.broadcast %cst_16 : f32 to vector<16x97xf32>
    %49 = arith.select %26, %43, %48 : vector<16x97xi1>, vector<16x97xf32>
    %cst_17 = arith.constant dense<0x7F800000> : vector<16xf32>
    %50 = vector.multi_reduction <minimumf>, %49, %cst_17 [1] : vector<16x97xf32> to vector<16xf32>
    %51 = vector.shape_cast %50 : vector<16xf32> to vector<16x1xf32>
    %52 = arith.subf %51, %47 : vector<16x1xf32>
    %cst_18 = arith.constant -4.60517025 : f32
    %53 = vector.broadcast %cst_18 : f32 to vector<16x1xf32>
    %54 = arith.maximumf %52, %53 : vector<16x1xf32>
    %55 = arith.addf %47, %54 : vector<16x1xf32>
    %56 = vector.broadcast %55 : vector<16x1xf32> to vector<16x97xf32>
    %57 = arith.subf %43, %56 : vector<16x97xf32>
    %cst_19 = arith.constant 0.000000e+00 : f32
    %58 = vector.broadcast %cst_19 : f32 to vector<16x97xf32>
    %59 = arith.maximumf %57, %58 : vector<16x97xf32>
    %cst_20 = arith.constant 2.000000e+00 : f32
    %60 = vector.broadcast %cst_20 : f32 to vector<16x97xf32>
    %61 = arith.mulf %60, %59 : vector<16x97xf32>
    %62 = arith.addf %39, %61 : vector<16x97xf32>
    %cst_21 = arith.constant 1.000000e+00 : f32
    %63 = vector.broadcast %cst_21 : f32 to vector<16x97xf32>
    %64 = arith.subf %63, %22 : vector<16x97xf32>
    %65 = arith.mulf %62, %64 : vector<16x97xf32>
    %66 = arith.addf %24, %65 : vector<16x97xf32>
    %cst_22 = arith.constant dense<0xFF800000> : vector<16xf32>
    %67 = vector.multi_reduction <maximumf>, %66, %cst_22 [1] : vector<16x97xf32> to vector<16xf32>
    %68 = vector.shape_cast %67 : vector<16xf32> to vector<16x1xf32>
    %69 = vector.broadcast %68 : vector<16x1xf32> to vector<16x97xf32>
    %70 = arith.subf %66, %69 : vector<16x97xf32>
    %71 = math.exp %70 : vector<16x97xf32>
    %cst_23 = arith.constant dense<0.000000e+00> : vector<16xf32>
    %72 = vector.multi_reduction <add>, %71, %cst_23 [1] : vector<16x97xf32> to vector<16xf32>
    %73 = vector.shape_cast %72 : vector<16xf32> to vector<16x1xf32>
    %74 = math.log %73 : vector<16x1xf32>
    %75 = arith.addf %68, %74 : vector<16x1xf32>
    %76 = vector.broadcast %75 : vector<16x1xf32> to vector<16x97xf32>
    %77 = arith.subf %76, %66 : vector<16x97xf32>
    %78 = arith.mulf %22, %77 : vector<16x97xf32>
    %cst_24 = arith.constant dense<0.000000e+00> : vector<16xf32>
    %79 = vector.multi_reduction <add>, %78, %cst_24 [1] : vector<16x97xf32> to vector<16xf32>
    %80 = vector.shape_cast %79 : vector<16xf32> to vector<16x1xf32>
    %cst_25 = arith.constant 0.000000e+00 : f32
    %81 = vector.broadcast %cst_25 : f32 to vector<16x1xf32>
    %82 = arith.select %20, %80, %81 : vector<16x1xi1>, vector<16x1xf32>
    %cst_26 = arith.constant dense<0.000000e+00> : vector<1xf32>
    %83 = vector.multi_reduction <add>, %82, %cst_26 [0] : vector<16x1xf32> to vector<1xf32>
    %84 = vector.shape_cast %83 : vector<1xf32> to vector<1x1xf32>
    %85 = arith.extui %20 : vector<16x1xi1> to vector<16x1xi32>
    %86 = arith.sitofp %85 : vector<16x1xi32> to vector<16x1xf32>
    %cst_27 = arith.constant dense<0.000000e+00> : vector<1xf32>
    %87 = vector.multi_reduction <add>, %86, %cst_27 [0] : vector<16x1xf32> to vector<1xf32>
    %88 = vector.shape_cast %87 : vector<1xf32> to vector<1x1xf32>
    %89 = tpu.iota {dimensions = array<i32: 1>} : vector<1x128xi32>
    %c0_i32_28 = arith.constant 0 : i32
    %90 = vector.broadcast %c0_i32_28 : i32 to vector<1x128xi32>
    %91 = arith.cmpi eq, %89, %90 : vector<1x128xi32>
    %cst_29 = arith.constant 0.000000e+00 : f32
    %92 = vector.shape_cast %84 : vector<1x1xf32> to vector<1x1xf32>
    %93 = vector.broadcast %92 : vector<1x1xf32> to vector<1x128xf32>
    %94 = vector.broadcast %cst_29 : f32 to vector<1x128xf32>
    %95 = arith.select %91, %93, %94 : vector<1x128xi1>, vector<1x128xf32>
    %c1_i32_30 = arith.constant 1 : i32
    %96 = vector.broadcast %c1_i32_30 : i32 to vector<1x128xi32>
    %97 = arith.cmpi eq, %89, %96 : vector<1x128xi32>
    %cst_31 = arith.constant 0.000000e+00 : f32
    %98 = vector.shape_cast %88 : vector<1x1xf32> to vector<1x1xf32>
    %99 = vector.broadcast %98 : vector<1x1xf32> to vector<1x128xf32>
    %100 = vector.broadcast %cst_31 : f32 to vector<1x128xf32>
    %101 = arith.select %97, %99, %100 : vector<1x128xi1>, vector<1x128xf32>
    %102 = arith.addf %95, %101 : vector<1x128xf32>
    %c0_32 = arith.constant 0 : index
    %c0_33 = arith.constant 0 : index
    %c0_34 = arith.constant 0 : index
    %103 = vector.load %arg4[%c0_32, %c0_33, %c0_34] : memref<1x1x128xf32, #tpu.memory_space<vmem>>, vector<1x1x128xf32>
    %104 = vector.shape_cast %103 : vector<1x1x128xf32> to vector<1x128xf32>
    %105 = vector.shape_cast %102 : vector<1x128xf32> to vector<1x1x128xf32>
    tpu.vector_store %arg4[%c0_32, %c0_33, %c0_34], %105 {strides = array<i32>} : memref<1x1x128xf32, #tpu.memory_space<vmem>>, vector<1x1x128xf32>,
    return
  }
  func.func @transform_0(%arg0: i32) -> (i32, i32) {
    %c0_i32 = arith.constant 0 : i32
    %c0_i32_0 = arith.constant 0 : i32
    return %arg0, %c0_i32 : i32, i32
  }
  func.func @transform_1(%arg0: i32) -> (i32, i32) {
    %c0_i32 = arith.constant 0 : i32
    %c0_i32_0 = arith.constant 0 : i32
    return %arg0, %c0_i32 : i32, i32
  }
  func.func @transform_2(%arg0: i32) -> (i32, i32) {
    %c0_i32 = arith.constant 0 : i32
    %c0_i32_0 = arith.constant 0 : i32
    %c0_i32_1 = arith.constant 0 : i32
    return %c0_i32, %c0_i32_0 : i32, i32
  }
  func.func @transform_3(%arg0: i32) -> (i32, i32, i32) {
    %c0_i32 = arith.constant 0 : i32
    %c0_i32_0 = arith.constant 0 : i32
    %c0_i32_1 = arith.constant 0 : i32
    return %arg0, %c0_i32, %c0_i32_0 : i32, i32, i32
  }
}

</mosaic_0001>

<llo_original>
// kernel: multip_cross_entropy_seesaw_loss.1
$region0: #{multip_cross_entropy_seesaw_loss.1}
  #allocation0 [shape = 'u32[]', space=smem, size = 0x4, offset = 0x4, fixed_abs, tag = 'smem constant byte address 0x4 - core index']
  #allocation1 [shape = 'u32[72,128]{1,0:T(1,128)}', space=vmem, size = 0x9000, scoped, tag = 'internal scratch']
  %s0 = inlined_call_operand.hbm [shape: f32[10,97], index: 0, kind: input, shape index: {}]
  %s1 = inlined_call_operand.vmem [shape: f32[10,97], index: 1, kind: input, shape index: {}]
  %s2 = inlined_call_operand.vmem [shape: f32[1,97], index: 2, kind: input, shape index: {}]
  %s3 = inlined_call_operand.vmem [shape: f32[1,1,128], index: 3, kind: output, shape index: {}]
  %s4 = sld [smem:[#allocation0]]
  $region26: #{multip_cross_entropy_seesaw_loss.1} parent=0
    _
  %s6 = ssub.s32 1, %s4
  %s7 = scalar_select 0, %s6, %s4
  $region1: #{multip_cross_entropy_seesaw_loss.1} parent=0
    #allocation2 [shape = 'u8[8192]{0}', space=vmem, size = 0x2000, scoped, tag = 'input window, operand 0, single buffered']
    #allocation3 [shape = 's32[1]{0}', space=sflag, size = 0x4, scoped, tag = 'scoped memory for multip_cross_entropy_seesaw_loss.1']
    %8 = vsyncpa [#allocation3], 0
    // Predicated region
    $region2: #{multip_cross_entropy_seesaw_loss.1} parent=1 // pred_check
      _
    $region3: #{multip_cross_entropy_seesaw_loss.1} parent=1 // pred_check_branch
      %10 = sbr.rel (0) target = $region5
    $region4: #{multip_cross_entropy_seesaw_loss.1} parent=1 // pred_region
      %12 = vsyncadd [#allocation3], 0
      %s13 = sshll.u32 %s0, 4
      %s14 = int_to_ptr.hbm [resolvable:$true] %s13
      %s15 = sshll.u32 [#allocation2], 4
      %s16 = int_to_ptr.vmem [resolvable:$true] %s15
      %21 = dma.hbm_to_vmem [thread:$0]  %s14, 256, %s16, [#allocation3], 128, 128, 8
    $region5: #{multip_cross_entropy_seesaw_loss.1} parent=1 // pred_fallthru
      _
    // Predicated region
    $region6: #{multip_cross_entropy_seesaw_loss.1} parent=1 // pred_check
      _
    $region7: #{multip_cross_entropy_seesaw_loss.1} parent=1 // pred_check_branch
      %23 = sbr.rel (0) target = $region9
    $region8: #{multip_cross_entropy_seesaw_loss.1} parent=1 // pred_region
      _
    $region9: #{multip_cross_entropy_seesaw_loss.1} parent=1 // pred_fallthru
      _
    // Predicated region
    $region10: #{multip_cross_entropy_seesaw_loss.1} parent=1 // pred_check
      _
    $region11: #{multip_cross_entropy_seesaw_loss.1} parent=1 // pred_check_branch
      %25 = sbr.rel (0) target = $region13
    $region12: #{multip_cross_entropy_seesaw_loss.1} parent=1 // pred_region
      _
    $region13: #{multip_cross_entropy_seesaw_loss.1} parent=1 // pred_fallthru
      _
    // Predicated region
    $region14: #{multip_cross_entropy_seesaw_loss.1} parent=1 // pred_check
      _
    $region15: #{multip_cross_entropy_seesaw_loss.1} parent=1 // pred_check_branch
      %27 = sbr.rel (0) target = $region17
    $region16: #{multip_cross_entropy_seesaw_loss.1} parent=1 // pred_region
      %29 = dma.done [#allocation3], 256
    $region17: #{multip_cross_entropy_seesaw_loss.1} parent=1 // pred_fallthru
      _
    %v30 = vld [vmem:[#allocation2] sm:$0xff]
    %v31 = vld [vmem:[#allocation2 + $0x8] sm:$0xff]
    %v32 = vld [vmem:[%s1] sm:$0xff]
    %v33 = vld [vmem:[%s1 + $0x8] sm:$0xff]
    %v34 = vld [vmem:[%s2] sm:$0x1]
    %v35 = vlaneseq
    %v36 = vand.u32 %v35, 127
    %vm37 = vcmp.ge.s32.totalorder %v36, 1
    %v38 = vlaneseq
    %v39 = vshrl.u32 %v38, 7
    %v40 = vadd.s32 %v39, 8
    %s41 = smul.u32 0, 16
    %v42 = vstv %s41
    %v43 = vadd.s32 %v39, %v42
    %v44 = vadd.s32 %v40, %v42
    %vm45 = vcmp.eq.s32.totalorder %v36, 0
    %v46 = vsel %vm45, %v32, 0.0
    %v47 = vsel %vm45, %v33, 0.0
    %vm48 = vcmask 793600
    %v49 = vsel %vm48, %v46, 0.0
    %50 = vadd.xlane.f32.xlu0 %v49
    %v51 = vpop.xlane.xlu0 %50
    %v52 = vsel %vm48, %v47, 0.0
    %53 = vadd.xlane.f32.xlu0 %v52
    %v54 = vpop.xlane.xlu0 %53
    %vm55 = vcmp.lt.s32.totalorder %v43, 10
    %vm56 = vcmp.lt.s32.totalorder %v44, 10
    %vm57 = vcmp.ne.f32.partialorder %v51, 1.0
    %vm58 = vcmp.ne.f32.partialorder %v54, 1.0
    %vm59 = vmand %vm55, %vm57
    %vm60 = vmand %vm56, %vm58
    %v61 = vsel %vm37, %v32, 0.0
    %v62 = vsel %vm37, %v33, 0.0
    %v63 = vsel %vm37, %v30, -1e+09
    %v64 = vsel %vm37, %v31, -1e+09
    %vm65 = vcmp.ne.f32.partialorder %v61, 0.0
    %vm66 = vcmp.ne.f32.partialorder %v62, 0.0
    %v68 = vperm.slane %v34, 0
    %v70 = vsel %vm65, %v68, -3e+38
    %v71 = vsel %vm66, %v68, -3e+38
    %v72 = vsel %vm48, %v70, -inf
    %73 = vmax.xlane.f32.xlu0 %v72
    %v74 = vpop.xlane.xlu0 %73
    %v75 = vsel %vm48, %v71, -inf
    %76 = vmax.xlane.f32.xlu0 %v75
    %v77 = vpop.xlane.xlu0 %76
    %v78 = vsub.f32 %v68, %v74
    %v79 = vsub.f32 %v68, %v77
    %v80 = vmin.f32 %v78, 0.0
    %v81 = vmin.f32 %v79, 0.0
    %v82 = vmul.f32 %v80, 0.8
    %v83 = vmul.f32 %v81, 0.8
    %v84 = vsel %vm48, %v63, -inf
    %85 = vmax.xlane.f32.xlu0 %v84
    %v86 = vpop.xlane.xlu0 %85
    %v87 = vsel %vm48, %v64, -inf
    %88 = vmax.xlane.f32.xlu0 %v87
    %v89 = vpop.xlane.xlu0 %88
    %v90 = vsub.f32 %v63, %v86
    %v91 = vsub.f32 %v64, %v89
    %v92 = vmul.f32 %v90, 1.442695
    %v93 = vpow.pop %v92
    %v94 = vmul.f32 %v91, 1.442695
    %v95 = vpow.pop %v94
    %v96 = vsel %vm48, %v93, 0.0
    %97 = vadd.xlane.f32.xlu0 %v96
    %v98 = vpop.xlane.xlu0 %97
    %v99 = vsel %vm48, %v95, 0.0
    %100 = vadd.xlane.f32.xlu0 %v99
    %v101 = vpop.xlane.xlu0 %100
    %v102 = vlog2.pop %v98
    %v103 = vmul.f32 %v102, 0.6931472
    %v104 = vlog2.pop %v101
    %v105 = vmul.f32 %v104, 0.6931472
    %v106 = vsel %vm65, %v90, 3e+38
    %v107 = vsel %vm66, %v91, 3e+38
    %v108 = vsel %vm48, %v106, inf
    %109 = vmin.xlane.f32.xlu0 %v108
    %v110 = vpop.xlane.xlu0 %109
    %v111 = vsel %vm48, %v107, inf
    %112 = vmin.xlane.f32.xlu0 %v111
    %v113 = vpop.xlane.xlu0 %112
    %v114 = vsub.f32 %v110, %v103
    %v115 = vsub.f32 %v113, %v105
    %v116 = vmax.f32 %v114, -4.6051702
    %v117 = vmax.f32 %v115, -4.6051702
    %v118 = vadd.f32 %v103, %v116
    %v119 = vadd.f32 %v105, %v117
    %v120 = vsub.f32 %v90, %v118
    %v121 = vsub.f32 %v91, %v119
    %v122 = vmax.f32 %v120, 0.0
    %v123 = vmax.f32 %v121, 0.0
    %v124 = vmul.f32 %v122, 2.0
    %v125 = vmul.f32 %v123, 2.0
    %v126 = vadd.f32 %v82, %v124
    %v127 = vadd.f32 %v83, %v125
    %v128 = vsub.f32 1.0, %v61
    %v129 = vsub.f32 1.0, %v62
    %v130 = vmul.f32 %v126, %v128
    %v131 = vmul.f32 %v127, %v129
    %v132 = vadd.f32 %v63, %v130
    %v133 = vadd.f32 %v64, %v131
    %v134 = vsel %vm48, %v132, -inf
    %135 = vmax.xlane.f32.xlu0 %v134
    %v136 = vpop.xlane.xlu0 %135
    %v137 = vsel %vm48, %v133, -inf
    %138 = vmax.xlane.f32.xlu0 %v137
    %v139 = vpop.xlane.xlu0 %138
    %v140 = vsub.f32 %v132, %v136
    %v141 = vsub.f32 %v133, %v139
    %v142 = vmul.f32 %v140, 1.442695
    %v143 = vpow.pop %v142
    %v144 = vmul.f32 %v141, 1.442695
    %v145 = vpow.pop %v144
    %v146 = vsel %vm48, %v143, 0.0
    %147 = vadd.xlane.f32.xlu0 %v146
    %v148 = vpop.xlane.xlu0 %147
    %v149 = vsel %vm48, %v145, 0.0
    %150 = vadd.xlane.f32.xlu0 %v149
    %v151 = vpop.xlane.xlu0 %150
    %v152 = vlog2.pop %v148
    %v153 = vmul.f32 %v152, 0.6931472
    %v154 = vlog2.pop %v151
    %v155 = vmul.f32 %v154, 0.6931472
    %v156 = vadd.f32 %v136, %v153
    %v157 = vadd.f32 %v139, %v155
    %v158 = vsub.f32 %v156, %v132
    %v159 = vsub.f32 %v157, %v133
    %v160 = vmul.f32 %v61, %v158
    %v161 = vmul.f32 %v62, %v159
    %v162 = vsel %vm48, %v160, 0.0
    %163 = vadd.xlane.f32.xlu0 %v162
    %v164 = vpop.xlane.xlu0 %163
    %v165 = vsel %vm48, %v161, 0.0
    %166 = vadd.xlane.f32.xlu0 %v165
    %v167 = vpop.xlane.xlu0 %166
    %v168 = vsel %vm59, %v164, 0.0
    %v169 = vsel %vm60, %v167, 0.0
    %v170 = vadd.f32 %v168, %v169
    %v171 = vrot.slane %v170, 4
    %v172 = vadd.f32 %v170, %v171
    %v173 = vrot.slane %v172, 2
    %v174 = vadd.f32 %v172, %v173
    %v175 = vrot.slane %v174, 1
    %v176 = vadd.f32 %v174, %v175
    %v177 = vsel %vm59, 1, 0
    %v178 = vsel %vm60, 1, 0
    %v179 = vcvt.s32.f32 %v177
    %v180 = vcvt.s32.f32 %v178
    %v181 = vadd.f32 %v179, %v180
    %v182 = vrot.slane %v181, 4
    %v183 = vadd.f32 %v181, %v182
    %v184 = vrot.slane %v183, 2
    %v185 = vadd.f32 %v183, %v184
    %v186 = vrot.slane %v185, 1
    %v187 = vadd.f32 %v185, %v186
    %v188 = vsel %vm45, %v176, 0.0
    %vm189 = vcmp.eq.s32.totalorder %v36, 1
    %v190 = vsel %vm189, %v187, 0.0
    %v191 = vadd.f32 %v188, %v190
    %192 = vst [vmem:[%s3] sm:$0x1] %v191
    // Predicated region
    $region18: #{multip_cross_entropy_seesaw_loss.1} parent=1 // pred_check
      _
    $region19: #{multip_cross_entropy_seesaw_loss.1} parent=1 // pred_check_branch
      %194 = sbr.rel (0) target = $region21
    $region20: #{multip_cross_entropy_seesaw_loss.1} parent=1 // pred_region
      _
    $region21: #{multip_cross_entropy_seesaw_loss.1} parent=1 // pred_fallthru
      _
    // Predicated region
    $region22: #{multip_cross_entropy_seesaw_loss.1} parent=1 // pred_check
      _
    $region23: #{multip_cross_entropy_seesaw_loss.1} parent=1 // pred_check_branch
      %196 = sbr.rel (0) target = $region25
    $region24: #{multip_cross_entropy_seesaw_loss.1} parent=1 // pred_region
      _
    $region25: #{multip_cross_entropy_seesaw_loss.1} parent=1 // pred_fallthru
      _
    %197 = vsyncpa [#allocation3], 1

</llo_original>
